<compile_context>
chip_gen: v7x
topology: tpu7x:2x2x1
jax: 0.10.0
libtpu: 0.0.40
codegen_flags: <defaults>
</compile_context>

<pallas_src>
import functools
import math

import jax
import jax.numpy as jnp
from jax.experimental import pallas as pl
from jax.experimental.pallas import tpu as pltpu


def _hflip_kernel(perm_ref, x_ref, o_ref):
    # o[r, l] = x[r, src(l)] via a 0/1 permutation matmul (exact for float
    # images; also exact for integer images up to 2^24 via the f32 compute,
    # which avoids the missing integer MXU path on v7x).
    xf = x_ref[...].astype(jnp.float32)
    y = jnp.dot(xf, perm_ref[...], preferred_element_type=jnp.float32)
    o_ref[...] = y.astype(o_ref.dtype)


def _perm_matrix(lanes, seg_w):
    """(lanes, lanes) 0/1 matrix reversing every contiguous seg_w-wide segment."""
    lane = jnp.arange(lanes, dtype=jnp.int32)
    pos = lane % seg_w
    src = lane - pos + (seg_w - 1 - pos)       # source lane feeding output lane
    return jnp.zeros((lanes, lanes), jnp.float32).at[src, lane].set(1.0)


def _pick_tile_rows(rows, lanes, itemsize):
    if rows <= 8:
        return rows                             # full-extent block (always legal)
    target_bytes = 2 << 20                      # ~2 MiB blocks: ~85% HBM roofline
    tr = max(8, (target_bytes // (lanes * itemsize)) // 8 * 8)
    half = ((-(-rows // 2)) + 7) // 8 * 8       # guarantee >=2 grid steps (v7x megacore)
    return min(tr, half)


def _hflip_pallas(x2d, w):
    rows, lanes = x2d.shape
    perm = _perm_matrix(lanes, w)
    tile_rows = _pick_tile_rows(rows, lanes, x2d.dtype.itemsize)
    return pl.pallas_call(
        _hflip_kernel,
        out_shape=jax.ShapeDtypeStruct((rows, lanes), x2d.dtype),
        grid=(pl.cdiv(rows, tile_rows),),
        in_specs=[
            pl.BlockSpec((lanes, lanes), lambda i: (0, 0)),        # resident perm
            pl.BlockSpec((tile_rows, lanes), lambda i: (i, 0)),
        ],
        out_specs=pl.BlockSpec((tile_rows, lanes), lambda i: (i, 0)),
        input_output_aliases={1: 0},            # in-place when img is donated
        compiler_params=pltpu.CompilerParams(
            dimension_semantics=("parallel",),
            vmem_limit_bytes=32 << 20,
        ),
    )(perm, x2d)


def random_horizontal_flip(img, key, p=0.5):
    """img: [..., H, W]. Returns (out, u) with u ~ U[0,1) of shape (1,)."""
    w = img.shape[-1]
    total = img.size

    # Lane-dense packing: smallest lane width that is a multiple of both W and
    # 128, so whole W-segments tile the lane axis and stores are unmasked.
    packed = w * 128 // math.gcd(w, 128)
    if packed <= 512 and total % packed == 0:
        lanes = packed
    else:
        # TODO(synk): W that doesn't pack into <=512 lanes falls back to
        # lane dim == W (masked stores when W % 128 != 0); a grid-level
        # lane-block reversal in the out_spec index_map would fix large W.
        lanes = w

    u = jax.random.uniform(key, (1,), dtype=jnp.float32)   # torch.rand(1)

    def do_flip(x):
        x2d = x.reshape(total // lanes, lanes)
        return _hflip_pallas(x2d, w).reshape(x.shape)

    out = jax.lax.cond(u[0] < jnp.float32(p), do_flip, lambda x: x, img)

    # TODO(synk): PyTorch returns a bare tensor when flipped and (img, p) when
    # not; JAX requires a static return structure, so we always return (out, u).
    return out, u


if __name__ == "__main__":
    key = jax.random.PRNGKey(0)
    k_img, k_p = jax.random.split(key)

    N, C, H, W = 2, 4, 16, 16
    img = jax.random.normal(k_img, (N, C, H, W), dtype=jnp.float32)
    p = 0.5

    # 1) Force the flip branch so the Pallas kernel definitely executes.
    out_f, _ = jax.jit(functools.partial(random_horizontal_flip, p=1.0))(img, k_p)
    out_f = jax.block_until_ready(out_f)
    assert out_f.shape == img.shape and out_f.dtype == img.dtype
    assert jnp.allclose(out_f, jnp.flip(img, axis=-1), atol=1e-6), "flip mismatch"

    # 2) Full module semantics at the default probability.
    out, u = jax.jit(functools.partial(random_horizontal_flip, p=p))(img, k_p)
    out = jax.block_until_ready(out)
    u = jax.block_until_ready(u)
    expected = jnp.where(u[0] < p, jnp.flip(img, axis=-1), img)
    assert jnp.allclose(out, expected, atol=1e-6), "mismatch vs reference"

    print("KERNEL_OK")
</pallas_src>

<mosaic_0001>
module attributes {stable_mosaic.version = 11 : i64} {
  func.func @_hflip_kernel(%arg0: i32, %arg1: memref<128x128xf32, #tpu.memory_space<vmem>>, %arg2: memref<8x128xf32, #tpu.memory_space<vmem>>, %arg3: memref<8x128xf32, #tpu.memory_space<vmem>>) attributes {dimension_semantics = [#tpu.dimension_semantics<parallel>], iteration_bounds = array<i64: 2>, scalar_prefetch = 0 : i64, scratch_operands = 0 : i64, tpu.core_type = #tpu.core_type<tc>, window_params = [{pipeline_mode = #tpu.pipeline_mode<synchronous>, transform_indices = @transform_0, window_bounds = array<i64: 128, 128>}, {transform_indices = @transform_1, window_bounds = array<i64: 8, 128>}, {transform_indices = @transform_2, window_bounds = array<i64: 8, 128>}]} {
    %c0 = arith.constant 0 : index
    %c0_0 = arith.constant 0 : index
    %0 = vector.load %arg2[%c0, %c0_0] : memref<8x128xf32, #tpu.memory_space<vmem>>, vector<8x128xf32>
    %c0_1 = arith.constant 0 : index
    %c0_2 = arith.constant 0 : index
    %1 = vector.load %arg1[%c0_1, %c0_2] : memref<128x128xf32, #tpu.memory_space<vmem>>, vector<128x128xf32>
    %cst = arith.constant dense<0.000000e+00> : vector<8x128xf32>
    %2 = tpu.matmul %0, %1, %cst {dimension_numbers = #tpu.dot_dimension_numbers<[1], [0], [0], [1], [0, 0, 1, 1], [], []>} : vector<8x128xf32>, vector<128x128xf32>, vector<8x128xf32> -> vector<8x128xf32>
    %c0_3 = arith.constant 0 : index
    %c0_4 = arith.constant 0 : index
    %3 = vector.load %arg3[%c0_3, %c0_4] : memref<8x128xf32, #tpu.memory_space<vmem>>, vector<8x128xf32>
    tpu.vector_store %arg3[%c0_3, %c0_4], %2 {strides = array<i32>} : memref<8x128xf32, #tpu.memory_space<vmem>>, vector<8x128xf32>,
    return
  }
  func.func @transform_0(%arg0: i32) -> (i32, i32) {
    %c0_i32 = arith.constant 0 : i32
    %c0_i32_0 = arith.constant 0 : i32
    %c0_i32_1 = arith.constant 0 : i32
    return %c0_i32, %c0_i32_0 : i32, i32
  }
  func.func @transform_1(%arg0: i32) -> (i32, i32) {
    %c0_i32 = arith.constant 0 : i32
    %c0_i32_0 = arith.constant 0 : i32
    return %arg0, %c0_i32 : i32, i32
  }
  func.func @transform_2(%arg0: i32) -> (i32, i32) {
    %c0_i32 = arith.constant 0 : i32
    %c0_i32_0 = arith.constant 0 : i32
    return %arg0, %c0_i32 : i32, i32
  }
}

</mosaic_0001>

<llo_original>
// kernel: branch_1_fun.1
$region0: #{branch_1_fun.1}
  #allocation0 [shape = 'u32[]', space=smem, size = 0x4, offset = 0x4, fixed_abs, tag = 'smem constant byte address 0x4 - core index']
  #allocation1 [shape = 'u32[144,128]{1,0:T(1,128)}', space=vmem, size = 0x12000, scoped, tag = 'internal scratch']
  %s0 = inlined_call_operand.vmem [shape: f32[128,128], index: 0, kind: input, shape index: {}]
  %s1 = inlined_call_operand.vmem [shape: f32[16,128], index: 1, kind: input, shape index: {}, may-alias: {1,2}]
  %s2 = inlined_call_operand.vmem [shape: f32[16,128], index: 2, kind: output, shape index: {}, may-alias: {1,2}]
  %s3 = sld [smem:[#allocation0]]
  $region41: #{branch_1_fun.1} parent=0
    _
  %s5 = ssub.s32 1, %s3
  %s6 = scalar_select 0, %s5, %s3
  loop: start=0, step=1, limit=4
  $region2: #{branch_1_fun.1} parent=0 // loop_pre_header
    _
  $region3: #{branch_1_fun.1} parent=0 // loop_header
    %s8 = sphi 0, %s12
    %p9 = scmp.ge.s32.totalorder %s8, 4
    %s16 = sphi 0, %s16
    %s18 = sphi 0, %s16
    %s19 = sphi 0, %s18
    %s33 = sphi 0, %s19
    %s39 = sphi 0, %s41
    %s42 = sphi 0, %s39
    %s43 = sphi 0, %s42
    %s59 = sphi 0, %s43
    %s65 = sphi 0, %s67
    %s68 = sphi 0, %s65
    %s69 = sphi 0, %s68
    %s85 = sphi 0, %s69
  $region4: #{branch_1_fun.1} parent=0 // loop_header_branch
    %11 = sbr.rel (%p9) target = $region8
  $region5: #{branch_1_fun.1} parent=0 // loop_body
    %s13 = ssub.s32 %s8, 1
    %s14 = ssub.s32 %s8, 2
    %s15 = sadd.s32 %s8, 1
    %s17 = sadd.s32 %s16, 1
    %p20 = scmp.eq.s32.totalorder %s8, 1
    %p21 = scmp.ne.s32.totalorder %s16, %s18
    %p22 = scmp.eq.s32.totalorder %s8, 0
    %p23 = por %p21, %p22
    %p24 = scmp.ne.s32.totalorder %s16, %s18
    %p25 = scmp.eq.s32.totalorder %s13, 1
    %p26 = por %p24, %p25
    %p27 = scmp.ne.s32.totalorder %s18, %s19
    %p28 = scmp.eq.s32.totalorder %s13, 0
    %p29 = por %p27, %p28
    %p30 = scmp.ne.s32.totalorder %s18, %s19
    %p31 = scmp.eq.s32.totalorder %s14, 1
    %p32 = por %p30, %p31
    %p34 = scmp.ne.s32.totalorder %s19, %s33
    %p35 = scmp.eq.s32.totalorder %s14, 0
    %p36 = por %p34, %p35
    %s37 = ssub.s32 %s8, %s15
    %p38 = scmp.eq.s32.totalorder %s37, 0
    %s40 = sadd.s32 %s39, 1
    %s41 = scalar_select %p38, %s39, %s40
    %p44 = pneg %p38
    %p45 = scmp.eq.s32.totalorder %s8, 1
    %p46 = por %p44, %p45
    %p47 = scmp.ne.s32.totalorder %s39, %s42
    %p48 = scmp.eq.s32.totalorder %s8, 0
    %p49 = por %p47, %p48
    %p50 = scmp.ne.s32.totalorder %s39, %s42
    %p51 = scmp.eq.s32.totalorder %s13, 1
    %p52 = por %p50, %p51
    %p53 = scmp.ne.s32.totalorder %s42, %s43
    %p54 = scmp.eq.s32.totalorder %s13, 0
    %p55 = por %p53, %p54
    %p56 = scmp.ne.s32.totalorder %s42, %s43
    %p57 = scmp.eq.s32.totalorder %s14, 1
    %p58 = por %p56, %p57
    %p60 = scmp.ne.s32.totalorder %s43, %s59
    %p61 = scmp.eq.s32.totalorder %s14, 0
    %p62 = por %p60, %p61
    %s63 = ssub.s32 %s8, %s15
    %p64 = scmp.eq.s32.totalorder %s63, 0
    %s66 = sadd.s32 %s65, 1
    %s67 = scalar_select %p64, %s65, %s66
    %p70 = pneg %p64
    %p71 = scmp.eq.s32.totalorder %s8, 1
    %p72 = por %p70, %p71
    %p73 = scmp.ne.s32.totalorder %s65, %s68
    %p74 = scmp.eq.s32.totalorder %s8, 0
    %p75 = por %p73, %p74
    %p76 = scmp.ne.s32.totalorder %s65, %s68
    %p77 = scmp.eq.s32.totalorder %s13, 1
    %p78 = por %p76, %p77
    %p79 = scmp.ne.s32.totalorder %s68, %s69
    %p80 = scmp.eq.s32.totalorder %s13, 0
    %p81 = por %p79, %p80
    %p82 = scmp.ne.s32.totalorder %s68, %s69
    %p83 = scmp.eq.s32.totalorder %s14, 1
    %p84 = por %p82, %p83
    %p86 = scmp.ne.s32.totalorder %s69, %s85
    %p87 = scmp.eq.s32.totalorder %s14, 0
    %p88 = por %p86, %p87
    %p89 = scmp.le.s32.totalorder 1, %s8
    %p90 = scmp.lt.s32.totalorder %s8, 3
    %p91 = pnand %p89, %p90
    %p92 = pneg %p91
    // Predicated region
    $region9: #{branch_1_fun.1} parent=5 // pred_check
      _
    $region10: #{branch_1_fun.1} parent=5 // pred_check_branch
      %94 = sbr.rel (%p91) target = $region12
    $region11: #{branch_1_fun.1} parent=5 // pred_region
      %s95 = ssub.s32 %s8, 1
      // Predicated region
      $region13: #{branch_1_fun.1} parent=11 // pred_check
        %p96 = pneg %p29
      $region14: #{branch_1_fun.1} parent=11 // pred_check_branch
        %98 = sbr.rel (%p96) target = $region16
      $region15: #{branch_1_fun.1} parent=11 // pred_region
        _
      $region16: #{branch_1_fun.1} parent=11 // pred_fallthru
        _
    $region12: #{branch_1_fun.1} parent=5 // pred_fallthru
      _
    %p99 = scmp.lt.s32.totalorder %s8, 2
    // Predicated region
    $region17: #{branch_1_fun.1} parent=5 // pred_check
      %p100 = pneg %p99
    $region18: #{branch_1_fun.1} parent=5 // pred_check_branch
      %102 = sbr.rel (%p100) target = $region20
    $region19: #{branch_1_fun.1} parent=5 // pred_region
      // Predicated region
      $region21: #{branch_1_fun.1} parent=19 // pred_check
        %p103 = pneg %p49
      $region22: #{branch_1_fun.1} parent=19 // pred_check_branch
        %105 = sbr.rel (%p103) target = $region24
      $region23: #{branch_1_fun.1} parent=19 // pred_region
        %p106 = scmp.lt.s32.totalorder %s8, 1
        %s107 = scalar_select %p106, %s8, 1
        %s108 = smul.addr %s107, 8
        %s109 = scalar_lea.vmem %s1, %s108
      $region24: #{branch_1_fun.1} parent=19 // pred_fallthru
        _
    $region20: #{branch_1_fun.1} parent=5 // pred_fallthru
      _
    %p110 = scmp.le.s32.totalorder 1, %s8
    %p111 = scmp.lt.s32.totalorder %s8, 3
    %p112 = pnand %p110, %p111
    %p113 = pneg %p112
    // Predicated region
    $region25: #{branch_1_fun.1} parent=5 // pred_check
      _
    $region26: #{branch_1_fun.1} parent=5 // pred_check_branch
      %115 = sbr.rel (%p112) target = $region28
    $region27: #{branch_1_fun.1} parent=5 // pred_region
      %s116 = ssub.s32 %s8, 1
      %p117 = pneg %p29
      %p118 = pneg %p26
      %p119 = scmp.lt.s32.totalorder %s13, 1
      %s120 = scalar_select %p119, %s13, 1
      %s121 = smul.addr %s120, 8
      %s122 = scalar_lea.vmem %s1, %s121
      %p123 = pneg %p55
      %p124 = pneg %p52
      %p125 = pneg %p81
      %p126 = pneg %p78
      %p127 = scmp.lt.s32.totalorder %s13, 1
      %s128 = scalar_select %p127, %s13, 1
      %s129 = smul.addr %s128, 8
      %s130 = scalar_lea.vmem %s2, %s129
      %p131 = scmp.lt.s32.totalorder %s13, 1
      %s132 = scalar_select %p131, %s13, 1
      %s133 = smul.addr %s132, 8
      %s134 = scalar_lea.vmem %s1, %s133
      %p135 = scmp.lt.s32.totalorder %s13, 1
      %s136 = scalar_select %p135, %s13, 1
      %s137 = smul.addr %s136, 8
      %s138 = scalar_lea.vmem %s2, %s137
      %v139 = vld [vmem:[%s134] sm:$0xff]
      %v140 = vld [vmem:[%s0] sm:$0xff]
      %v141 = vld [vmem:[%s0 + $0x8] sm:$0xff]
      %v142 = vld [vmem:[%s0 + $0x10] sm:$0xff]
      %v143 = vld [vmem:[%s0 + $0x18] sm:$0xff]
      %v144 = vld [vmem:[%s0 + $0x20] sm:$0xff]
      %v145 = vld [vmem:[%s0 + $0x28] sm:$0xff]
      %v146 = vld [vmem:[%s0 + $0x30] sm:$0xff]
      %v147 = vld [vmem:[%s0 + $0x38] sm:$0xff]
      %v148 = vld [vmem:[%s0 + $0x40] sm:$0xff]
      %v149 = vld [vmem:[%s0 + $0x48] sm:$0xff]
      %v150 = vld [vmem:[%s0 + $0x50] sm:$0xff]
      %v151 = vld [vmem:[%s0 + $0x58] sm:$0xff]
      %v152 = vld [vmem:[%s0 + $0x60] sm:$0xff]
      %v153 = vld [vmem:[%s0 + $0x68] sm:$0xff]
      %v154 = vld [vmem:[%s0 + $0x70] sm:$0xff]
      %v155 = vld [vmem:[%s0 + $0x78] sm:$0xff]
      %156 = vmatprep.subr.mxu0 0.0
      %157 = vmatpush1.msra.mxu0 %v140
      %158 = vmatprep.subr.mxu0 0.0
      %159 = vmatpush1.msra.mxu0 %v141
      %160 = vmatprep.subr.mxu0 0.0
      %161 = vmatpush1.msra.mxu0 %v142
      %162 = vmatprep.subr.mxu0 0.0
      %163 = vmatpush1.msra.mxu0 %v143
      %164 = vmatprep.subr.mxu0 0.0
      %165 = vmatpush1.msra.mxu0 %v144
      %166 = vmatprep.subr.mxu0 0.0
      %167 = vmatpush1.msra.mxu0 %v145
      %168 = vmatprep.subr.mxu0 0.0
      %169 = vmatpush1.msra.mxu0 %v146
      %170 = vmatprep.subr.mxu0 0.0
      %171 = vmatpush1.msra.mxu0 %v147
      %172 = vmatprep.subr.mxu0 0.0
      %173 = vmatpush1.msra.mxu0 %v148
      %174 = vmatprep.subr.mxu0 0.0
      %175 = vmatpush1.msra.mxu0 %v149
      %176 = vmatprep.subr.mxu0 0.0
      %177 = vmatpush1.msra.mxu0 %v150
      %178 = vmatprep.subr.mxu0 0.0
      %179 = vmatpush1.msra.mxu0 %v151
      %180 = vmatprep.subr.mxu0 0.0
      %181 = vmatpush1.msra.mxu0 %v152
      %182 = vmatprep.subr.mxu0 0.0
      %183 = vmatpush1.msra.mxu0 %v153
      %184 = vmatprep.subr.mxu0 0.0
      %185 = vmatpush1.msra.mxu0 %v154
      %186 = vmatprep.subr.mxu0 0.0
      %187 = vmatpush1.msra.mxu0 %v155
      %188 = vmatprep.subr.mxu0 0.0
      %189 = vmatpush1.msra.mxu0 0.0
      %190 = vmatprep.subr.mxu0 0.0
      %191 = vmatpush1.msra.mxu0 0.0
      %192 = vmatprep.subr.mxu0 0.0
      %193 = vmatpush1.msra.mxu0 0.0
      %194 = vmatprep.subr.mxu0 0.0
      %195 = vmatpush1.msra.mxu0 0.0
      %196 = vmatprep.subr.mxu0 0.0
      %197 = vmatpush1.msra.mxu0 0.0
      %198 = vmatprep.subr.mxu0 0.0
      %199 = vmatpush1.msra.mxu0 0.0
      %200 = vmatprep.subr.mxu0 0.0
      %201 = vmatpush1.msra.mxu0 0.0
      %202 = vmatprep.subr.mxu0 0.0
      %203 = vmatpush1.msra.mxu0 0.0
      %204 = vmatprep.subr.mxu0 0.0
      %205 = vmatpush1.msra.mxu0 0.0
      %206 = vmatprep.subr.mxu0 0.0
      %207 = vmatpush1.msra.mxu0 0.0
      %208 = vmatprep.subr.mxu0 0.0
      %209 = vmatpush1.msra.mxu0 0.0
      %210 = vmatprep.subr.mxu0 0.0
      %211 = vmatpush1.msra.mxu0 0.0
      %212 = vmatprep.subr.mxu0 0.0
      %213 = vmatpush1.msra.mxu0 0.0
      %214 = vmatprep.subr.mxu0 0.0
      %215 = vmatpush1.msra.mxu0 0.0
      %216 = vmatprep.subr.mxu0 0.0
      %217 = vmatpush1.msra.mxu0 0.0
      %218 = vmatprep.subr.mxu0 0.0
      %219 = vmatpush1.msra.mxu0 0.0
      %220 = vmatprep.mubr.f32.mxu0 0.0
      %221 = vmatmul.mubr.f32.gmra.mrb[0].mxu0 %v139
      %v222 = vpop.f32.mrb[0].mxu0
      %v223 = vadd.f32 0.0, %v222
      %v224 = vpop.f32.mrb[0].mxu0
      %225 = vdwg.mxu0
      %226 = vst [vmem:[%s138] sm:$0xff] %v223
      %p227 = scmp.lt.s32.totalorder %s13, 1
      %s228 = scalar_select %p227, %s13, 1
      %s229 = smul.addr %s228, 8
      %s230 = scalar_lea.vmem %s2, %s229
      // Predicated region
      $region29: #{branch_1_fun.1} parent=27 // pred_check
        %p231 = pneg %p78
      $region30: #{branch_1_fun.1} parent=27 // pred_check_branch
        %233 = sbr.rel (%p231) target = $region32
      $region31: #{branch_1_fun.1} parent=27 // pred_region
        _
      $region32: #{branch_1_fun.1} parent=27 // pred_fallthru
        _
    $region28: #{branch_1_fun.1} parent=5 // pred_fallthru
      _
    %p234 = scmp.le.s32.totalorder 2, %s8
    // Predicated region
    $region33: #{branch_1_fun.1} parent=5 // pred_check
      %p235 = pneg %p234
    $region34: #{branch_1_fun.1} parent=5 // pred_check_branch
      %237 = sbr.rel (%p235) target = $region36
    $region35: #{branch_1_fun.1} parent=5 // pred_region
      %s238 = ssub.s32 %s8, 2
      // Predicated region
      $region37: #{branch_1_fun.1} parent=35 // pred_check
        %p239 = pneg %p84
      $region38: #{branch_1_fun.1} parent=35 // pred_check_branch
        %241 = sbr.rel (%p239) target = $region40
      $region39: #{branch_1_fun.1} parent=35 // pred_region
        %p242 = scmp.lt.s32.totalorder %s14, 1
        %s243 = scalar_select %p242, %s14, 1
        %s244 = smul.addr %s243, 8
        %s245 = scalar_lea.vmem %s2, %s244
      $region40: #{branch_1_fun.1} parent=35 // pred_fallthru
        _
    $region36: #{branch_1_fun.1} parent=5 // pred_fallthru
      _
  $region6: #{branch_1_fun.1} parent=0 // loop_footer
    %s12 = sadd.s32 1, %s8
  $region7: #{branch_1_fun.1} parent=0 // loop_footer_branch
    %7 = sbr.rel target = $region3
  $region8: #{branch_1_fun.1} parent=0 // loop_exit
    _

</llo_original>
